<compile_context>
chip_gen: v7x
topology: tpu7x:2x2x1
jax: 0.10.0
libtpu: 0.0.40
codegen_flags: <defaults>
</compile_context>

<pallas_src>
import functools

import jax
import jax.numpy as jnp
from jax.experimental import pallas as pl
from jax.experimental.pallas import tpu as pltpu


def _scores_kernel(x_ref, w1_ref, b1_ref, w2r_ref, part_ref, *,
                   n_total, n_views, emb_dim, mxu_dtype):
    """Phase 1: per-block partial sums of the per-view projection scores."""
    i = pl.program_id(0)
    tn = x_ref.shape[0]

    x = x_ref[...].astype(jnp.float32)                      # (TN, V*D), cast in VMEM

    # F.normalize(p=2, dim=views, eps=1e-12):
    #   x / max(||x||, 1e-12) == x * rsqrt(max(sum_v x^2, 1e-24))
    sumsq = jnp.zeros((tn, emb_dim), jnp.float32)
    for vi in range(n_views):
        xv = x[:, vi * emb_dim:(vi + 1) * emb_dim]
        sumsq = sumsq + xv * xv
    inv = jax.lax.rsqrt(jnp.maximum(sumsq, 1e-24))           # (TN, D)

    w1 = w1_ref[...]                                         # (D, 2D) in MXU dtype
    b1 = b1_ref[...]                                         # (1, 2D) f32
    w2r = w2r_ref[...]                                       # (1, 2D) f32

    cols = []
    for vi in range(n_views):                                # small V -> static unroll
        tmp_v = (x[:, vi * emb_dim:(vi + 1) * emb_dim] * inv).astype(mxu_dtype)
        act = jnp.tanh(
            jnp.dot(tmp_v, w1, preferred_element_type=jnp.float32) + b1)  # (TN, 2D) f32
        # second Linear (2D -> 1, no bias): lane reduce on the natural 2-D layout
        cols.append(jnp.sum(act * w2r, axis=-1, keepdims=True))           # (TN, 1)
    s = jnp.concatenate(cols, axis=-1)                       # (TN, V)

    # mask padded rows of a partial last block (garbage/NaN rows are discarded)
    row = jax.lax.broadcasted_iota(jnp.int32, (tn, 1), 0) + i * tn
    s = jnp.where(row < n_total, s, 0.0)

    part_ref[...] = jnp.sum(s, axis=0, keepdims=True).reshape(1, 1, n_views)


def _apply_kernel(beta_ref, x_ref, out_ref, *, n_views, emb_dim):
    """Phase 2: fused = sum_v beta_v * reprs[:, v, :] on the (TN, V*D) slab."""
    xb = x_ref[...].astype(jnp.float32) * beta_ref[...]      # beta pre-expanded to V*D lanes
    acc = xb[:, :emb_dim]
    for vi in range(1, n_views):
        acc = acc + xb[:, vi * emb_dim:(vi + 1) * emb_dim]
    out_ref[...] = acc.astype(out_ref.dtype)


def _vmem_limit_bytes():
    """~3/4 of physical VMEM: raises every generation's scoped default safely."""
    try:
        cap = pltpu.get_tpu_info().vmem_capacity_bytes
    except Exception:
        cap = 64 * 1024 * 1024
    return int(min(cap * 3 // 4, 128 * 1024 * 1024))


def _choose_tile_n(n, n_views, emb_dim, in_dtype, hidden, mxu_dtype, vmem_limit):
    in_bytes = jnp.dtype(in_dtype).itemsize
    mxu_bytes = jnp.dtype(mxu_dtype).itemsize
    # constant operands are double-buffered by the default pipeline: budget 2x
    weight_bytes = 2 * (emb_dim * hidden * mxu_bytes + 2 * hidden * 4)
    # per batch row: 2x streamed input (double-buffered) + f32 copy + normalize
    # temps (~3*D) + projection activation / tanh temps (~2*H), all f32
    per_row = (2 * n_views * emb_dim * in_bytes
               + 4 * (n_views * emb_dim + 3 * emb_dim + 2 * hidden))
    budget = int(vmem_limit * 0.6) - weight_bytes            # headroom for Mosaic scratch
    tn = max(1, budget // max(per_row, 1))
    tn = min(tn, n)
    if tn < n:
        tn = max(8, (tn // 8) * 8)                           # keep (8,128)-aligned blocks
    elif n >= 16:
        # whole batch fits in one block: still split >=2 ways so the 'parallel'
        # grid axis can shard across both v7x TensorCores (~0.35us/step extra)
        tn = (((n + 1) // 2) + 7) // 8 * 8
    return tn


def multi_view_fusion(reprs, w1, b1, w2, *, mxu_dtype=jnp.bfloat16, tile_n=None):
    """reprs: (N, V, D); w1: (D, 2D); b1: (2D,) or (1, 2D); w2: (2D, 1).
    Returns (fused (N, D) f32, beta (V,) f32)."""
    n, v, d = reprs.shape
    h = w1.shape[1]

    x2 = reprs.reshape(n, v * d)                  # free contiguous view; native dtype
    w1m = w1.astype(mxu_dtype)
    b1r = jnp.asarray(b1, jnp.float32).reshape(1, h)
    w2r = jnp.asarray(w2, jnp.float32).reshape(1, h)

    vmem_limit = _vmem_limit_bytes()
    if tile_n is None:
        tile_n = _choose_tile_n(n, v, d, reprs.dtype, h, mxu_dtype, vmem_limit)
    nblk = pl.cdiv(n, tile_n)
    cparams = pltpu.CompilerParams(dimension_semantics=("parallel",),
                                   vmem_limit_bytes=vmem_limit)

    # ---- phase 1: per-block partial view scores (fully parallel over batch blocks)
    partials = pl.pallas_call(
        functools.partial(_scores_kernel, n_total=n, n_views=v, emb_dim=d,
                          mxu_dtype=mxu_dtype),
        grid=(nblk,),
        in_specs=[
            pl.BlockSpec((tile_n, v * d), lambda i: (i, 0)),   # streamed batch slabs
            pl.BlockSpec((d, h), lambda i: (0, 0)),            # constant-index weights
            pl.BlockSpec((1, h), lambda i: (0, 0)),
            pl.BlockSpec((1, h), lambda i: (0, 0)),
        ],
        out_specs=pl.BlockSpec((1, 1, v), lambda i: (i, 0, 0)),
        out_shape=jax.ShapeDtypeStruct((nblk, 1, v), jnp.float32),
        compiler_params=cparams,
    )(x2, w1m, b1r, w2r)

    # tiny (nblk, V) -> (V,) epilogue in the wrapper: mean over batch, softmax over views
    w_mean = jnp.sum(partials, axis=(0, 1)) * (1.0 / n)
    beta = jax.nn.softmax(w_mean)                              # (V,)
    beta_exp = jnp.repeat(beta, d).reshape(1, v * d)           # lane-expanded weights

    # ---- phase 2: fused = sum_v beta_v * reprs[:, v, :]
    fused = pl.pallas_call(
        functools.partial(_apply_kernel, n_views=v, emb_dim=d),
        grid=(nblk,),
        in_specs=[
            pl.BlockSpec((1, v * d), lambda i: (0, 0)),        # beta resident
            pl.BlockSpec((tile_n, v * d), lambda i: (i, 0)),
        ],
        out_specs=pl.BlockSpec((tile_n, d), lambda i: (i, 0)),
        out_shape=jax.ShapeDtypeStruct((n, d), jnp.float32),
        compiler_params=cparams,
    )(beta_exp, x2)

    return fused, beta


def _reference(reprs_f32, w1, b1, w2):
    """Pure-JAX reference matching the PyTorch module."""
    norm = jnp.sqrt(jnp.sum(reprs_f32 * reprs_f32, axis=1, keepdims=True))
    tmp = reprs_f32 / jnp.maximum(norm, 1e-12)
    s = jnp.tanh(tmp @ w1 + b1.reshape(1, -1)) @ w2            # (N, V, 1)
    beta = jax.nn.softmax(jnp.mean(s, axis=0), axis=0)         # (V, 1)
    fused = jnp.sum(beta[None] * reprs_f32, axis=1)            # (N, D)
    return fused, beta[:, 0]


if __name__ == "__main__":
    key = jax.random.PRNGKey(0)

    def make_params(k, d, h):
        k_w1, k_b1, k_w2 = jax.random.split(k, 3)
        bound1 = (6.0 / (d + h)) ** 0.5            # xavier-uniform (module's init)
        w1 = jax.random.uniform(k_w1, (d, h), minval=-bound1, maxval=bound1,
                                dtype=jnp.float32)
        b_bound = 1.0 / (d ** 0.5)                 # torch default Linear bias init
        b1 = jax.random.uniform(k_b1, (h,), minval=-b_bound, maxval=b_bound,
                                dtype=jnp.float32)
        bound2 = (6.0 / (h + 1)) ** 0.5
        w2 = jax.random.uniform(k_w2, (h, 1), minval=-bound2, maxval=bound2,
                                dtype=jnp.float32)
        return w1, b1, w2

    k1, k2, k3 = jax.random.split(key, 3)

    # --- case 1: small shapes, exact f32 MXU path ----------------------------
    N, V, D = 2, 4, 32
    H = 2 * D
    reprs = jax.random.normal(k1, (N, V, D), dtype=jnp.float32)
    w1, b1, w2 = make_params(k2, D, H)

    fused, beta = multi_view_fusion(reprs, w1, b1, w2, mxu_dtype=jnp.float32)
    jax.block_until_ready((fused, beta))
    fused_ref, beta_ref = _reference(reprs, w1, b1, w2)
    assert jnp.allclose(fused, fused_ref, atol=1e-5, rtol=1e-5), "case1 fused mismatch"
    assert jnp.allclose(beta, beta_ref, atol=1e-5, rtol=1e-5), "case1 beta mismatch"

    # --- case 2: multi-block grid + partial last block + unaligned D ---------
    N2, V2, D2 = 20, 3, 40
    H2 = 2 * D2
    reprs2 = jax.random.normal(k3, (N2, V2, D2), dtype=jnp.float32)
    w1b, b1b, w2b = make_params(k2, D2, H2)
    fused2, beta2 = multi_view_fusion(reprs2, w1b, b1b, w2b,
                                      mxu_dtype=jnp.float32, tile_n=8)
    jax.block_until_ready((fused2, beta2))
    fused2_ref, beta2_ref = _reference(reprs2, w1b, b1b, w2b)
    assert jnp.allclose(fused2, fused2_ref, atol=1e-5, rtol=1e-5), "case2 fused mismatch"
    assert jnp.allclose(beta2, beta2_ref, atol=1e-5, rtol=1e-5), "case2 beta mismatch"

    # --- case 3: native bf16 streaming + bf16 MXU operands (default path) ----
    reprs_bf16 = reprs.astype(jnp.bfloat16)
    fused3, beta3 = multi_view_fusion(reprs_bf16, w1, b1, w2)   # mxu_dtype=bf16 default
    jax.block_until_ready((fused3, beta3))
    fused3_ref, beta3_ref = _reference(reprs_bf16.astype(jnp.float32), w1, b1, w2)
    assert jnp.allclose(fused3, fused3_ref, atol=2e-2, rtol=2e-2), "case3 fused mismatch"
    assert jnp.allclose(beta3, beta3_ref, atol=2e-2, rtol=2e-2), "case3 beta mismatch"

    print("KERNEL_OK")
</pallas_src>

<mosaic_0001>
module attributes {stable_mosaic.version = 11 : i64} {
  func.func @_scores_kernel(%arg0: i32, %arg1: memref<2x128xf32, #tpu.memory_space<vmem>>, %arg2: memref<32x64xf32, #tpu.memory_space<vmem>>, %arg3: memref<1x64xf32, #tpu.memory_space<vmem>>, %arg4: memref<1x64xf32, #tpu.memory_space<vmem>>, %arg5: memref<1x1x4xf32, #tpu.memory_space<vmem>>) attributes {dimension_semantics = [#tpu.dimension_semantics<parallel>], iteration_bounds = array<i64: 1>, scalar_prefetch = 0 : i64, scratch_operands = 0 : i64, tpu.core_type = #tpu.core_type<tc>, window_params = [{transform_indices = @transform_0, window_bounds = array<i64: 2, 128>}, {pipeline_mode = #tpu.pipeline_mode<synchronous>, transform_indices = @transform_1, window_bounds = array<i64: 32, 64>}, {pipeline_mode = #tpu.pipeline_mode<synchronous>, transform_indices = @transform_2, window_bounds = array<i64: 1, 64>}, {pipeline_mode = #tpu.pipeline_mode<synchronous>, transform_indices = @transform_3, window_bounds = array<i64: 1, 64>}, {transform_indices = @transform_4, window_bounds = array<i64: 1, 1, 4>}]} {
    %c0 = arith.constant 0 : index
    %c0_0 = arith.constant 0 : index
    %0 = vector.load %arg1[%c0, %c0_0] : memref<2x128xf32, #tpu.memory_space<vmem>>, vector<2x128xf32>
    %cst = arith.constant 0.000000e+00 : f32
    %1 = vector.broadcast %cst : f32 to vector<2x32xf32>
    %2 = vector.extract_strided_slice %0 {offsets = [0, 0], sizes = [2, 32], strides = [1, 1]} : vector<2x128xf32> to vector<2x32xf32>
    %3 = arith.mulf %2, %2 : vector<2x32xf32>
    %4 = arith.addf %1, %3 : vector<2x32xf32>
    %5 = vector.extract_strided_slice %0 {offsets = [0, 32], sizes = [2, 32], strides = [1, 1]} : vector<2x128xf32> to vector<2x32xf32>
    %6 = arith.mulf %5, %5 : vector<2x32xf32>
    %7 = arith.addf %4, %6 : vector<2x32xf32>
    %8 = vector.extract_strided_slice %0 {offsets = [0, 64], sizes = [2, 32], strides = [1, 1]} : vector<2x128xf32> to vector<2x32xf32>
    %9 = arith.mulf %8, %8 : vector<2x32xf32>
    %10 = arith.addf %7, %9 : vector<2x32xf32>
    %11 = vector.extract_strided_slice %0 {offsets = [0, 96], sizes = [2, 32], strides = [1, 1]} : vector<2x128xf32> to vector<2x32xf32>
    %12 = arith.mulf %11, %11 : vector<2x32xf32>
    %13 = arith.addf %10, %12 : vector<2x32xf32>
    %cst_1 = arith.constant 1.000000e-24 : f32
    %14 = vector.broadcast %cst_1 : f32 to vector<2x32xf32>
    %15 = arith.maximumf %13, %14 : vector<2x32xf32>
    %16 = math.rsqrt %15 : vector<2x32xf32>
    %c0_2 = arith.constant 0 : index
    %c0_3 = arith.constant 0 : index
    %17 = vector.load %arg2[%c0_2, %c0_3] : memref<32x64xf32, #tpu.memory_space<vmem>>, vector<32x64xf32>
    %c0_4 = arith.constant 0 : index
    %c0_5 = arith.constant 0 : index
    %18 = vector.load %arg3[%c0_4, %c0_5] : memref<1x64xf32, #tpu.memory_space<vmem>>, vector<1x64xf32>
    %c0_6 = arith.constant 0 : index
    %c0_7 = arith.constant 0 : index
    %19 = vector.load %arg4[%c0_6, %c0_7] : memref<1x64xf32, #tpu.memory_space<vmem>>, vector<1x64xf32>
    %20 = vector.extract_strided_slice %0 {offsets = [0, 0], sizes = [2, 32], strides = [1, 1]} : vector<2x128xf32> to vector<2x32xf32>
    %21 = arith.mulf %20, %16 : vector<2x32xf32>
    %cst_8 = arith.constant dense<0.000000e+00> : vector<2x64xf32>
    %22 = tpu.matmul %21, %17, %cst_8 {dimension_numbers = #tpu.dot_dimension_numbers<[1], [0], [0], [1], [0, 0, 1, 1], [], []>} : vector<2x32xf32>, vector<32x64xf32>, vector<2x64xf32> -> vector<2x64xf32>
    %23 = vector.broadcast %18 : vector<1x64xf32> to vector<2x64xf32>
    %24 = arith.addf %22, %23 : vector<2x64xf32>
    %25 = math.tanh %24 : vector<2x64xf32>
    %26 = vector.broadcast %19 : vector<1x64xf32> to vector<2x64xf32>
    %27 = arith.mulf %25, %26 : vector<2x64xf32>
    %cst_9 = arith.constant dense<0.000000e+00> : vector<2xf32>
    %28 = vector.multi_reduction <add>, %27, %cst_9 [1] : vector<2x64xf32> to vector<2xf32>
    %29 = vector.shape_cast %28 : vector<2xf32> to vector<2x1xf32>
    %30 = vector.extract_strided_slice %0 {offsets = [0, 32], sizes = [2, 32], strides = [1, 1]} : vector<2x128xf32> to vector<2x32xf32>
    %31 = arith.mulf %30, %16 : vector<2x32xf32>
    %cst_10 = arith.constant dense<0.000000e+00> : vector<2x64xf32>
    %32 = tpu.matmul %31, %17, %cst_10 {dimension_numbers = #tpu.dot_dimension_numbers<[1], [0], [0], [1], [0, 0, 1, 1], [], []>} : vector<2x32xf32>, vector<32x64xf32>, vector<2x64xf32> -> vector<2x64xf32>
    %33 = vector.broadcast %18 : vector<1x64xf32> to vector<2x64xf32>
    %34 = arith.addf %32, %33 : vector<2x64xf32>
    %35 = math.tanh %34 : vector<2x64xf32>
    %36 = vector.broadcast %19 : vector<1x64xf32> to vector<2x64xf32>
    %37 = arith.mulf %35, %36 : vector<2x64xf32>
    %cst_11 = arith.constant dense<0.000000e+00> : vector<2xf32>
    %38 = vector.multi_reduction <add>, %37, %cst_11 [1] : vector<2x64xf32> to vector<2xf32>
    %39 = vector.shape_cast %38 : vector<2xf32> to vector<2x1xf32>
    %40 = vector.extract_strided_slice %0 {offsets = [0, 64], sizes = [2, 32], strides = [1, 1]} : vector<2x128xf32> to vector<2x32xf32>
    %41 = arith.mulf %40, %16 : vector<2x32xf32>
    %cst_12 = arith.constant dense<0.000000e+00> : vector<2x64xf32>
    %42 = tpu.matmul %41, %17, %cst_12 {dimension_numbers = #tpu.dot_dimension_numbers<[1], [0], [0], [1], [0, 0, 1, 1], [], []>} : vector<2x32xf32>, vector<32x64xf32>, vector<2x64xf32> -> vector<2x64xf32>
    %43 = vector.broadcast %18 : vector<1x64xf32> to vector<2x64xf32>
    %44 = arith.addf %42, %43 : vector<2x64xf32>
    %45 = math.tanh %44 : vector<2x64xf32>
    %46 = vector.broadcast %19 : vector<1x64xf32> to vector<2x64xf32>
    %47 = arith.mulf %45, %46 : vector<2x64xf32>
    %cst_13 = arith.constant dense<0.000000e+00> : vector<2xf32>
    %48 = vector.multi_reduction <add>, %47, %cst_13 [1] : vector<2x64xf32> to vector<2xf32>
    %49 = vector.shape_cast %48 : vector<2xf32> to vector<2x1xf32>
    %50 = vector.extract_strided_slice %0 {offsets = [0, 96], sizes = [2, 32], strides = [1, 1]} : vector<2x128xf32> to vector<2x32xf32>
    %51 = arith.mulf %50, %16 : vector<2x32xf32>
    %cst_14 = arith.constant dense<0.000000e+00> : vector<2x64xf32>
    %52 = tpu.matmul %51, %17, %cst_14 {dimension_numbers = #tpu.dot_dimension_numbers<[1], [0], [0], [1], [0, 0, 1, 1], [], []>} : vector<2x32xf32>, vector<32x64xf32>, vector<2x64xf32> -> vector<2x64xf32>
    %53 = vector.broadcast %18 : vector<1x64xf32> to vector<2x64xf32>
    %54 = arith.addf %52, %53 : vector<2x64xf32>
    %55 = math.tanh %54 : vector<2x64xf32>
    %56 = vector.broadcast %19 : vector<1x64xf32> to vector<2x64xf32>
    %57 = arith.mulf %55, %56 : vector<2x64xf32>
    %cst_15 = arith.constant dense<0.000000e+00> : vector<2xf32>
    %58 = vector.multi_reduction <add>, %57, %cst_15 [1] : vector<2x64xf32> to vector<2xf32>
    %59 = vector.shape_cast %58 : vector<2xf32> to vector<2x1xf32>
    %60 = tpu.concatenate %29, %39, %49, %59 in 1 : vector<2x1xf32>, vector<2x1xf32>, vector<2x1xf32>, vector<2x1xf32> -> vector<2x4xf32>
    %61 = tpu.iota {dimensions = array<i32: 0>} : vector<2x1xi32>
    %c2_i32 = arith.constant 2 : i32
    %62 = arith.muli %arg0, %c2_i32 : i32
    %63 = vector.broadcast %62 : i32 to vector<2x1xi32>
    %64 = arith.addi %61, %63 : vector<2x1xi32>
    %c2_i32_16 = arith.constant 2 : i32
    %65 = vector.broadcast %c2_i32_16 : i32 to vector<2x1xi32>
    %66 = arith.cmpi slt, %64, %65 : vector<2x1xi32>
    %cst_17 = arith.constant 0.000000e+00 : f32
    %67 = vector.shape_cast %66 : vector<2x1xi1> to vector<2x1xi1>
    %68 = vector.broadcast %67 : vector<2x1xi1> to vector<2x4xi1>
    %69 = vector.broadcast %cst_17 : f32 to vector<2x4xf32>
    %70 = arith.select %68, %60, %69 : vector<2x4xi1>, vector<2x4xf32>
    %cst_18 = arith.constant dense<0.000000e+00> : vector<4xf32>
    %71 = vector.multi_reduction <add>, %70, %cst_18 [0] : vector<2x4xf32> to vector<4xf32>
    %72 = vector.shape_cast %71 : vector<4xf32> to vector<1x4xf32>
    %73 = vector.shape_cast %72 : vector<1x4xf32> to vector<1x1x4xf32>
    %c0_19 = arith.constant 0 : index
    %c0_20 = arith.constant 0 : index
    %c0_21 = arith.constant 0 : index
    %74 = vector.load %arg5[%c0_19, %c0_20, %c0_21] : memref<1x1x4xf32, #tpu.memory_space<vmem>>, vector<1x1x4xf32>
    tpu.vector_store %arg5[%c0_19, %c0_20, %c0_21], %73 {strides = array<i32>} : memref<1x1x4xf32, #tpu.memory_space<vmem>>, vector<1x1x4xf32>,
    return
  }
  func.func @transform_0(%arg0: i32) -> (i32, i32) {
    %c0_i32 = arith.constant 0 : i32
    %c0_i32_0 = arith.constant 0 : i32
    return %arg0, %c0_i32 : i32, i32
  }
  func.func @transform_1(%arg0: i32) -> (i32, i32) {
    %c0_i32 = arith.constant 0 : i32
    %c0_i32_0 = arith.constant 0 : i32
    %c0_i32_1 = arith.constant 0 : i32
    return %c0_i32, %c0_i32_0 : i32, i32
  }
  func.func @transform_2(%arg0: i32) -> (i32, i32) {
    %c0_i32 = arith.constant 0 : i32
    %c0_i32_0 = arith.constant 0 : i32
    %c0_i32_1 = arith.constant 0 : i32
    return %c0_i32, %c0_i32_0 : i32, i32
  }
  func.func @transform_3(%arg0: i32) -> (i32, i32) {
    %c0_i32 = arith.constant 0 : i32
    %c0_i32_0 = arith.constant 0 : i32
    %c0_i32_1 = arith.constant 0 : i32
    return %c0_i32, %c0_i32_0 : i32, i32
  }
  func.func @transform_4(%arg0: i32) -> (i32, i32, i32) {
    %c0_i32 = arith.constant 0 : i32
    %c0_i32_0 = arith.constant 0 : i32
    %c0_i32_1 = arith.constant 0 : i32
    return %arg0, %c0_i32, %c0_i32_0 : i32, i32, i32
  }
}

</mosaic_0001>

<llo_original>
// kernel: tpu_custom_call.1
$region0: #{tpu_custom_call.1}
  #allocation0 [shape = 'u32[]', space=smem, size = 0x4, offset = 0x4, fixed_abs, tag = 'smem constant byte address 0x4 - core index']
  #allocation1 [shape = 'u32[144,128]{1,0:T(1,128)}', space=vmem, size = 0x12000, scoped, tag = 'internal scratch']
  %s0 = inlined_call_operand.hbm [shape: f32[2,128], index: 0, kind: input, shape index: {}]
  %s1 = inlined_call_operand.hbm [shape: f32[32,64], index: 1, kind: input, shape index: {}]
  %s2 = inlined_call_operand.vmem [shape: f32[1,64], index: 2, kind: input, shape index: {}]
  %s3 = inlined_call_operand.vmem [shape: f32[1,64], index: 3, kind: input, shape index: {}]
  %s4 = inlined_call_operand.hbm [shape: f32[1,1,4], index: 4, kind: output, shape index: {}]
  %s5 = sld [smem:[#allocation0]]
  $region34: #{tpu_custom_call.1} parent=0
    _
  %s7 = ssub.s32 1, %s5
  %s8 = scalar_select 0, %s7, %s5
  $region1: #{tpu_custom_call.1} parent=0
    #allocation2 [shape = 'u8[1024]{0}', space=vmem, size = 0x400, scoped, tag = 'input window, operand 0, single buffered']
    #allocation3 [shape = 's32[1]{0}', space=sflag, size = 0x4, scoped, tag = 'scoped memory for tpu_custom_call.1']
    #allocation4 [shape = 's32[1]{0}', space=sflag, size = 0x4, scoped, tag = 'scoped memory for tpu_custom_call.1']
    #allocation5 [shape = 'u8[16384]{0}', space=vmem, size = 0x4000, scoped, tag = 'input window, operand 1, single buffered']
    #allocation6 [shape = 's32[1]{0}', space=sflag, size = 0x4, scoped, tag = 'scoped memory for tpu_custom_call.1']
    #allocation7 [shape = 'u8[512]{0}', space=vmem, size = 0x400, scoped, tag = 'output window, operand 0, single buffered']
    %9 = vsyncpa [#allocation3], 0
    %10 = vsyncpa [#allocation6], 0
    %11 = vsyncpa [#allocation4], 0
    // Predicated region
    $region2: #{tpu_custom_call.1} parent=1 // pred_check
      _
    $region3: #{tpu_custom_call.1} parent=1 // pred_check_branch
      %13 = sbr.rel (0) target = $region5
    $region4: #{tpu_custom_call.1} parent=1 // pred_region
      %s15 = ssub.s32 32, 32
      %16 = vsyncadd [#allocation3], %s15
      %s18 = sshll.u32 [#allocation2], 4
      %s19 = int_to_ptr.vmem [resolvable:$true] %s18
      %21 = dma.hbm_to_vmem [thread:$0]  %s0, 32, %s19, [#allocation3]
    $region5: #{tpu_custom_call.1} parent=1 // pred_fallthru
      _
    // Predicated region
    $region6: #{tpu_custom_call.1} parent=1 // pred_check
      _
    $region7: #{tpu_custom_call.1} parent=1 // pred_check_branch
      %23 = sbr.rel (0) target = $region9
    $region8: #{tpu_custom_call.1} parent=1 // pred_region
      %s25 = ssub.s32 512, 512
      %26 = vsyncadd [#allocation6], %s25
      %s27 = sshll.u32 [#allocation5], 4
      %s28 = int_to_ptr.vmem [resolvable:$true] %s27
      %33 = dma.hbm_to_vmem [thread:$0]  %s1, 512, %s28, [#allocation6], 128, 128, 8
    $region9: #{tpu_custom_call.1} parent=1 // pred_fallthru
      _
    // Predicated region
    $region10: #{tpu_custom_call.1} parent=1 // pred_check
      _
    $region11: #{tpu_custom_call.1} parent=1 // pred_check_branch
      %35 = sbr.rel (0) target = $region13
    $region12: #{tpu_custom_call.1} parent=1 // pred_region
      _
    $region13: #{tpu_custom_call.1} parent=1 // pred_fallthru
      _
    // Predicated region
    $region14: #{tpu_custom_call.1} parent=1 // pred_check
      _
    $region15: #{tpu_custom_call.1} parent=1 // pred_check_branch
      %37 = sbr.rel (0) target = $region17
    $region16: #{tpu_custom_call.1} parent=1 // pred_region
      _
    $region17: #{tpu_custom_call.1} parent=1 // pred_fallthru
      _
    // Predicated region
    $region18: #{tpu_custom_call.1} parent=1 // pred_check
      _
    $region19: #{tpu_custom_call.1} parent=1 // pred_check_branch
      %39 = sbr.rel (0) target = $region21
    $region20: #{tpu_custom_call.1} parent=1 // pred_region
      %40 = dma.done [#allocation3], 32
    $region21: #{tpu_custom_call.1} parent=1 // pred_fallthru
      _
    // Predicated region
    $region22: #{tpu_custom_call.1} parent=1 // pred_check
      _
    $region23: #{tpu_custom_call.1} parent=1 // pred_check_branch
      %42 = sbr.rel (0) target = $region25
    $region24: #{tpu_custom_call.1} parent=1 // pred_region
      %43 = dma.done [#allocation6], 512
    $region25: #{tpu_custom_call.1} parent=1 // pred_fallthru
      _
    %v44 = vld [vmem:[#allocation2] sm:$0x3]
    %v45 = vmul.f32 %v44, %v44
    %v46 = vadd.f32 %v45, 0.0
    %48 = vrot.lane.b32.xlu0 %v45, 96
    %v49 = vpop.permute.xlu0 %48
    %v51 = vadd.f32 %v46, %v49
    %52 = vrot.lane.b32.xlu0 %v45, 64
    %v53 = vpop.permute.xlu0 %52
    %v55 = vadd.f32 %v51, %v53
    %56 = vrot.lane.b32.xlu0 %v45, 32
    %v57 = vpop.permute.xlu0 %56
    %v59 = vadd.f32 %v55, %v57
    %v60 = vmax.f32 %v59, 1e-24
    %v61 = vrsqrt.pop %v60
    %v62 = vld [vmem:[#allocation5] sm:$0xff]
    %v63 = vld [vmem:[#allocation5 + $0x8] sm:$0xff]
    %v64 = vld [vmem:[#allocation5 + $0x10] sm:$0xff]
    %v65 = vld [vmem:[#allocation5 + $0x18] sm:$0xff]
    %v66 = vld [vmem:[%s2] sm:$0x1]
    %v67 = vld [vmem:[%s3] sm:$0x1]
    %v68 = vmul.f32 %v44, %v61
    %v70 = vlaneseq
    %v71 = vshrl.u32 %v70, 7
    %v72 = vsub.s32 0, %v71
    %v73 = vrot.slane %v66, %v72
    %vm75 = vcmask 261120
    %v77 = vsel %vm75, %v68, 0
    %79 = vmatprep.subr.mxu0 0.0
    %80 = vmatpush1.msra.mxu0 %v62
    %81 = vmatprep.subr.mxu0 0.0
    %82 = vmatpush1.msra.mxu0 %v63
    %83 = vmatprep.subr.mxu0 0.0
    %84 = vmatpush1.msra.mxu0 %v64
    %85 = vmatprep.subr.mxu0 0.0
    %86 = vmatpush1.msra.mxu0 %v65
    %87 = vmatprep.subr.mxu0 0.0
    %88 = vmatpush1.msra.mxu0 0.0
    %89 = vmatprep.subr.mxu0 0.0
    %90 = vmatpush1.msra.mxu0 0.0
    %91 = vmatprep.subr.mxu0 0.0
    %92 = vmatpush1.msra.mxu0 0.0
    %93 = vmatprep.subr.mxu0 0.0
    %94 = vmatpush1.msra.mxu0 0.0
    %95 = vmatprep.subr.mxu0 0.0
    %96 = vmatpush1.msra.mxu0 0.0
    %97 = vmatprep.subr.mxu0 0.0
    %98 = vmatpush1.msra.mxu0 0.0
    %99 = vmatprep.subr.mxu0 0.0
    %100 = vmatpush1.msra.mxu0 0.0
    %101 = vmatprep.subr.mxu0 0.0
    %102 = vmatpush1.msra.mxu0 0.0
    %103 = vmatprep.subr.mxu0 0.0
    %104 = vmatpush1.msra.mxu0 0.0
    %105 = vmatprep.subr.mxu0 0.0
    %106 = vmatpush1.msra.mxu0 0.0
    %107 = vmatprep.subr.mxu0 0.0
    %108 = vmatpush1.msra.mxu0 0.0
    %109 = vmatprep.subr.mxu0 0.0
    %110 = vmatpush1.msra.mxu0 0.0
    %111 = vmatprep.subr.mxu0 0.0
    %112 = vmatpush1.msra.mxu0 0.0
    %113 = vmatprep.subr.mxu0 0.0
    %114 = vmatpush1.msra.mxu0 0.0
    %115 = vmatprep.subr.mxu0 0.0
    %116 = vmatpush1.msra.mxu0 0.0
    %117 = vmatprep.subr.mxu0 0.0
    %118 = vmatpush1.msra.mxu0 0.0
    %119 = vmatprep.subr.mxu0 0.0
    %120 = vmatpush1.msra.mxu0 0.0
    %121 = vmatprep.subr.mxu0 0.0
    %122 = vmatpush1.msra.mxu0 0.0
    %123 = vmatprep.subr.mxu0 0.0
    %124 = vmatpush1.msra.mxu0 0.0
    %125 = vmatprep.subr.mxu0 0.0
    %126 = vmatpush1.msra.mxu0 0.0
    %127 = vmatprep.subr.mxu0 0.0
    %128 = vmatpush1.msra.mxu0 0.0
    %129 = vmatprep.subr.mxu0 0.0
    %130 = vmatpush1.msra.mxu0 0.0
    %131 = vmatprep.subr.mxu0 0.0
    %132 = vmatpush1.msra.mxu0 0.0
    %133 = vmatprep.subr.mxu0 0.0
    %134 = vmatpush1.msra.mxu0 0.0
    %135 = vmatprep.subr.mxu0 0.0
    %136 = vmatpush1.msra.mxu0 0.0
    %137 = vmatprep.subr.mxu0 0.0
    %138 = vmatpush1.msra.mxu0 0.0
    %139 = vmatprep.subr.mxu0 0.0
    %140 = vmatpush1.msra.mxu0 0.0
    %141 = vmatprep.subr.mxu0 0.0
    %142 = vmatpush1.msra.mxu0 0.0
    %143 = vmatprep.mubr.f32.mxu0 0.0
    %144 = vmatmul.mubr.f32.gmra.mrb[0].mxu0 %v77
    %v145 = vpop.f32.mrb[0].mxu0
    %v146 = vadd.f32 %v73, %v145
    %v147 = vpop.f32.mrb[0].mxu0
    %148 = vdwg.mxu0
    %v149 = vtanh.pop %v146
    %v151 = vlaneseq
    %v152 = vshrl.u32 %v151, 7
    %v153 = vsub.s32 0, %v152
    %v154 = vrot.slane %v67, %v153
    %v156 = vmul.f32 %v149, %v154
    %vm157 = vcmask 517120
    %v158 = vsel %vm157, %v156, 0.0
    %159 = vadd.xlane.f32.xlu0 %v158
    %v160 = vpop.xlane.xlu0 %159
    %162 = vrot.lane.b32.xlu0 %v61, 32
    %v163 = vpop.permute.xlu0 %162
    %v165 = vmul.f32 %v44, %v163
    %167 = vrot.lane.b32.xlu0 %v165, 96
    %v168 = vpop.permute.xlu0 %167
    %v169 = vsel %vm75, %v168, 0
    %171 = vmatprep.subr.mxu0 0.0
    %172 = vmatpush1.msra.mxu0 %v62
    %173 = vmatprep.subr.mxu0 0.0
    %174 = vmatpush1.msra.mxu0 %v63
    %175 = vmatprep.subr.mxu0 0.0
    %176 = vmatpush1.msra.mxu0 %v64
    %177 = vmatprep.subr.mxu0 0.0
    %178 = vmatpush1.msra.mxu0 %v65
    %179 = vmatprep.subr.mxu0 0.0
    %180 = vmatpush1.msra.mxu0 0.0
    %181 = vmatprep.subr.mxu0 0.0
    %182 = vmatpush1.msra.mxu0 0.0
    %183 = vmatprep.subr.mxu0 0.0
    %184 = vmatpush1.msra.mxu0 0.0
    %185 = vmatprep.subr.mxu0 0.0
    %186 = vmatpush1.msra.mxu0 0.0
    %187 = vmatprep.subr.mxu0 0.0
    %188 = vmatpush1.msra.mxu0 0.0
    %189 = vmatprep.subr.mxu0 0.0
    %190 = vmatpush1.msra.mxu0 0.0
    %191 = vmatprep.subr.mxu0 0.0
    %192 = vmatpush1.msra.mxu0 0.0
    %193 = vmatprep.subr.mxu0 0.0
    %194 = vmatpush1.msra.mxu0 0.0
    %195 = vmatprep.subr.mxu0 0.0
    %196 = vmatpush1.msra.mxu0 0.0
    %197 = vmatprep.subr.mxu0 0.0
    %198 = vmatpush1.msra.mxu0 0.0
    %199 = vmatprep.subr.mxu0 0.0
    %200 = vmatpush1.msra.mxu0 0.0
    %201 = vmatprep.subr.mxu0 0.0
    %202 = vmatpush1.msra.mxu0 0.0
    %203 = vmatprep.subr.mxu0 0.0
    %204 = vmatpush1.msra.mxu0 0.0
    %205 = vmatprep.subr.mxu0 0.0
    %206 = vmatpush1.msra.mxu0 0.0
    %207 = vmatprep.subr.mxu0 0.0
    %208 = vmatpush1.msra.mxu0 0.0
    %209 = vmatprep.subr.mxu0 0.0
    %210 = vmatpush1.msra.mxu0 0.0
    %211 = vmatprep.subr.mxu0 0.0
    %212 = vmatpush1.msra.mxu0 0.0
    %213 = vmatprep.subr.mxu0 0.0
    %214 = vmatpush1.msra.mxu0 0.0
    %215 = vmatprep.subr.mxu0 0.0
    %216 = vmatpush1.msra.mxu0 0.0
    %217 = vmatprep.subr.mxu0 0.0
    %218 = vmatpush1.msra.mxu0 0.0
    %219 = vmatprep.subr.mxu0 0.0
    %220 = vmatpush1.msra.mxu0 0.0
    %221 = vmatprep.subr.mxu0 0.0
    %222 = vmatpush1.msra.mxu0 0.0
    %223 = vmatprep.subr.mxu0 0.0
    %224 = vmatpush1.msra.mxu0 0.0
    %225 = vmatprep.subr.mxu0 0.0
    %226 = vmatpush1.msra.mxu0 0.0
    %227 = vmatprep.subr.mxu0 0.0
    %228 = vmatpush1.msra.mxu0 0.0
    %229 = vmatprep.subr.mxu0 0.0
    %230 = vmatpush1.msra.mxu0 0.0
    %231 = vmatprep.subr.mxu0 0.0
    %232 = vmatpush1.msra.mxu0 0.0
    %233 = vmatprep.subr.mxu0 0.0
    %234 = vmatpush1.msra.mxu0 0.0
    %235 = vmatprep.mubr.f32.mxu0 0.0
    %236 = vmatmul.mubr.f32.gmra.mrb[0].mxu0 %v169
    %v237 = vpop.f32.mrb[0].mxu0
    %v238 = vadd.f32 %v73, %v237
    %v239 = vpop.f32.mrb[0].mxu0
    %240 = vdwg.mxu0
    %v241 = vtanh.pop %v238
    %v242 = vmul.f32 %v241, %v154
    %v243 = vsel %vm157, %v242, 0.0
    %244 = vadd.xlane.f32.xlu0 %v243
    %v245 = vpop.xlane.xlu0 %244
    %246 = vrot.lane.b32.xlu0 %v61, 64
    %v247 = vpop.permute.xlu0 %246
    %v249 = vmul.f32 %v44, %v247
    %251 = vrot.lane.b32.xlu0 %v249, 64
    %v252 = vpop.permute.xlu0 %251
    %v253 = vsel %vm75, %v252, 0
    %255 = vmatprep.subr.mxu0 0.0
    %256 = vmatpush1.msra.mxu0 %v62
    %257 = vmatprep.subr.mxu0 0.0
    %258 = vmatpush1.msra.mxu0 %v63
    %259 = vmatprep.subr.mxu0 0.0
    %260 = vmatpush1.msra.mxu0 %v64
    %261 = vmatprep.subr.mxu0 0.0
    %262 = vmatpush1.msra.mxu0 %v65
    %263 = vmatprep.subr.mxu0 0.0
    %264 = vmatpush1.msra.mxu0 0.0
    %265 = vmatprep.subr.mxu0 0.0
    %266 = vmatpush1.msra.mxu0 0.0
    %267 = vmatprep.subr.mxu0 0.0
    %268 = vmatpush1.msra.mxu0 0.0
    %269 = vmatprep.subr.mxu0 0.0
    %270 = vmatpush1.msra.mxu0 0.0
    %271 = vmatprep.subr.mxu0 0.0
    %272 = vmatpush1.msra.mxu0 0.0
    %273 = vmatprep.subr.mxu0 0.0
    %274 = vmatpush1.msra.mxu0 0.0
    %275 = vmatprep.subr.mxu0 0.0
    %276 = vmatpush1.msra.mxu0 0.0
    %277 = vmatprep.subr.mxu0 0.0
    %278 = vmatpush1.msra.mxu0 0.0
    %279 = vmatprep.subr.mxu0 0.0
    %280 = vmatpush1.msra.mxu0 0.0
    %281 = vmatprep.subr.mxu0 0.0
    %282 = vmatpush1.msra.mxu0 0.0
    %283 = vmatprep.subr.mxu0 0.0
    %284 = vmatpush1.msra.mxu0 0.0
    %285 = vmatprep.subr.mxu0 0.0
    %286 = vmatpush1.msra.mxu0 0.0
    %287 = vmatprep.subr.mxu0 0.0
    %288 = vmatpush1.msra.mxu0 0.0
    %289 = vmatprep.subr.mxu0 0.0
    %290 = vmatpush1.msra.mxu0 0.0
    %291 = vmatprep.subr.mxu0 0.0
    %292 = vmatpush1.msra.mxu0 0.0
    %293 = vmatprep.subr.mxu0 0.0
    %294 = vmatpush1.msra.mxu0 0.0
    %295 = vmatprep.subr.mxu0 0.0
    %296 = vmatpush1.msra.mxu0 0.0
    %297 = vmatprep.subr.mxu0 0.0
    %298 = vmatpush1.msra.mxu0 0.0
    %299 = vmatprep.subr.mxu0 0.0
    %300 = vmatpush1.msra.mxu0 0.0
    %301 = vmatprep.subr.mxu0 0.0
    %302 = vmatpush1.msra.mxu0 0.0
    %303 = vmatprep.subr.mxu0 0.0
    %304 = vmatpush1.msra.mxu0 0.0
    %305 = vmatprep.subr.mxu0 0.0
    %306 = vmatpush1.msra.mxu0 0.0
    %307 = vmatprep.subr.mxu0 0.0
    %308 = vmatpush1.msra.mxu0 0.0
    %309 = vmatprep.subr.mxu0 0.0
    %310 = vmatpush1.msra.mxu0 0.0
    %311 = vmatprep.subr.mxu0 0.0
    %312 = vmatpush1.msra.mxu0 0.0
    %313 = vmatprep.subr.mxu0 0.0
    %314 = vmatpush1.msra.mxu0 0.0
    %315 = vmatprep.subr.mxu0 0.0
    %316 = vmatpush1.msra.mxu0 0.0
    %317 = vmatprep.subr.mxu0 0.0
    %318 = vmatpush1.msra.mxu0 0.0
    %319 = vmatprep.mubr.f32.mxu0 0.0
    %320 = vmatmul.mubr.f32.gmra.mrb[0].mxu0 %v253
    %v321 = vpop.f32.mrb[0].mxu0
    %v322 = vadd.f32 %v73, %v321
    %v323 = vpop.f32.mrb[0].mxu0
    %324 = vdwg.mxu0
    %v325 = vtanh.pop %v322
    %v326 = vmul.f32 %v325, %v154
    %v327 = vsel %vm157, %v326, 0.0
    %328 = vadd.xlane.f32.xlu0 %v327
    %v329 = vpop.xlane.xlu0 %328
    %330 = vrot.lane.b32.xlu0 %v61, 96
    %v331 = vpop.permute.xlu0 %330
    %v333 = vmul.f32 %v44, %v331
    %335 = vrot.lane.b32.xlu0 %v333, 32
    %v336 = vpop.permute.xlu0 %335
    %v337 = vsel %vm75, %v336, 0
    %339 = vmatprep.subr.mxu0 0.0
    %340 = vmatpush1.msra.mxu0 %v62
    %341 = vmatprep.subr.mxu0 0.0
    %342 = vmatpush1.msra.mxu0 %v63
    %343 = vmatprep.subr.mxu0 0.0
    %344 = vmatpush1.msra.mxu0 %v64
    %345 = vmatprep.subr.mxu0 0.0
    %346 = vmatpush1.msra.mxu0 %v65
    %347 = vmatprep.subr.mxu0 0.0
    %348 = vmatpush1.msra.mxu0 0.0
    %349 = vmatprep.subr.mxu0 0.0
    %350 = vmatpush1.msra.mxu0 0.0
    %351 = vmatprep.subr.mxu0 0.0
    %352 = vmatpush1.msra.mxu0 0.0
    %353 = vmatprep.subr.mxu0 0.0
    %354 = vmatpush1.msra.mxu0 0.0
    %355 = vmatprep.subr.mxu0 0.0
    %356 = vmatpush1.msra.mxu0 0.0
    %357 = vmatprep.subr.mxu0 0.0
    %358 = vmatpush1.msra.mxu0 0.0
    %359 = vmatprep.subr.mxu0 0.0
    %360 = vmatpush1.msra.mxu0 0.0
    %361 = vmatprep.subr.mxu0 0.0
    %362 = vmatpush1.msra.mxu0 0.0
    %363 = vmatprep.subr.mxu0 0.0
    %364 = vmatpush1.msra.mxu0 0.0
    %365 = vmatprep.subr.mxu0 0.0
    %366 = vmatpush1.msra.mxu0 0.0
    %367 = vmatprep.subr.mxu0 0.0
    %368 = vmatpush1.msra.mxu0 0.0
    %369 = vmatprep.subr.mxu0 0.0
    %370 = vmatpush1.msra.mxu0 0.0
    %371 = vmatprep.subr.mxu0 0.0
    %372 = vmatpush1.msra.mxu0 0.0
    %373 = vmatprep.subr.mxu0 0.0
    %374 = vmatpush1.msra.mxu0 0.0
    %375 = vmatprep.subr.mxu0 0.0
    %376 = vmatpush1.msra.mxu0 0.0
    %377 = vmatprep.subr.mxu0 0.0
    %378 = vmatpush1.msra.mxu0 0.0
    %379 = vmatprep.subr.mxu0 0.0
    %380 = vmatpush1.msra.mxu0 0.0
    %381 = vmatprep.subr.mxu0 0.0
    %382 = vmatpush1.msra.mxu0 0.0
    %383 = vmatprep.subr.mxu0 0.0
    %384 = vmatpush1.msra.mxu0 0.0
    %385 = vmatprep.subr.mxu0 0.0
    %386 = vmatpush1.msra.mxu0 0.0
    %387 = vmatprep.subr.mxu0 0.0
    %388 = vmatpush1.msra.mxu0 0.0
    %389 = vmatprep.subr.mxu0 0.0
    %390 = vmatpush1.msra.mxu0 0.0
    %391 = vmatprep.subr.mxu0 0.0
    %392 = vmatpush1.msra.mxu0 0.0
    %393 = vmatprep.subr.mxu0 0.0
    %394 = vmatpush1.msra.mxu0 0.0
    %395 = vmatprep.subr.mxu0 0.0
    %396 = vmatpush1.msra.mxu0 0.0
    %397 = vmatprep.subr.mxu0 0.0
    %398 = vmatpush1.msra.mxu0 0.0
    %399 = vmatprep.subr.mxu0 0.0
    %400 = vmatpush1.msra.mxu0 0.0
    %401 = vmatprep.subr.mxu0 0.0
    %402 = vmatpush1.msra.mxu0 0.0
    %403 = vmatprep.mubr.f32.mxu0 0.0
    %404 = vmatmul.mubr.f32.gmra.mrb[0].mxu0 %v337
    %v405 = vpop.f32.mrb[0].mxu0
    %v406 = vadd.f32 %v73, %v405
    %v407 = vpop.f32.mrb[0].mxu0
    %408 = vdwg.mxu0
    %v409 = vtanh.pop %v406
    %v410 = vmul.f32 %v409, %v154
    %v411 = vsel %vm157, %v410, 0.0
    %412 = vadd.xlane.f32.xlu0 %v411
    %v413 = vpop.xlane.xlu0 %412
    %vm414 = vcmask 7168
    %v415 = vsel %vm414, %v160, %v245
    %vm416 = vcmask 15360
    %v417 = vsel %vm416, %v415, %v329
    %vm418 = vcmask 23552
    %v419 = vsel %vm418, %v417, %v413
    %v420 = vlaneseq
    %v421 = vshrl.u32 %v420, 7
    %s422 = smul.u32 0, 2
    %v423 = vstv %s422
    %v424 = vadd.s32 %v421, %v423
    %vm425 = vcmp.lt.s32.totalorder %v424, 2
    %v426 = vsel %vm425, 1, 0
    %vm427 = vcmp.eq.s32.totalorder %v426, 1
    %v428 = vsel %vm427, %v419, 0.0
    %vm429 = vcmask 25600
    %v430 = vsel %vm429, %v428, 0.0
    %v431 = vrot.slane %v430, 4
    %v432 = vadd.f32 %v430, %v431
    %v433 = vrot.slane %v432, 2
    %v434 = vadd.f32 %v432, %v433
    %v435 = vrot.slane %v434, 1
    %v436 = vadd.f32 %v434, %v435
    %vm437 = vcmask 24576
    %438 = vst.msk [vmem:[#allocation7] sm:$0x1] %vm437, %v436
    // Predicated region
    $region26: #{tpu_custom_call.1} parent=1 // pred_check
      _
    $region27: #{tpu_custom_call.1} parent=1 // pred_check_branch
      %440 = sbr.rel (0) target = $region29
    $region28: #{tpu_custom_call.1} parent=1 // pred_region
      %s442 = ssub.s32 16, 16
      %443 = vsyncadd [#allocation4], %s442
      %s445 = sshll.u32 [#allocation7], 4
      %s446 = int_to_ptr.vmem [resolvable:$true] %s445
      %448 = dma.vmem_to_hbm [thread:$0]  %s446, 16, %s4, [#allocation4]
    $region29: #{tpu_custom_call.1} parent=1 // pred_fallthru
      _
    // Predicated region
    $region30: #{tpu_custom_call.1} parent=1 // pred_check
      _
    $region31: #{tpu_custom_call.1} parent=1 // pred_check_branch
      %450 = sbr.rel (0) target = $region33
    $region32: #{tpu_custom_call.1} parent=1 // pred_region
      %451 = dma.done [#allocation4], 16
    $region33: #{tpu_custom_call.1} parent=1 // pred_fallthru
      _
    %452 = vsyncpa [#allocation3], 1
    %453 = vsyncpa [#allocation6], 1
    %454 = vsyncpa [#allocation4], 1

</llo_original>
